<compile_context>
chip_gen: v6e
topology: v6e:2x2x1
jax: 0.10.0
libtpu: 0.0.40
codegen_flags: <defaults>
</compile_context>

<pallas_src>
import jax
import jax.numpy as jnp
from jax import lax
from jax.experimental import pallas as pl
from jax.experimental.pallas import tpu as pltpu


# ----------------------------------------------------------------------------
# Kernel: grid = (N-blocks, K-blocks), K (reduction) innermost.
# ----------------------------------------------------------------------------
def linear_add_kernel(x_ref, w_ref, b_ref, other_ref, o_ref, acc_ref):
    k = pl.program_id(1)

    @pl.when(k == 0)
    def _():
        acc_ref[...] = jnp.zeros_like(acc_ref)

    # x_ref: (1, TK) bf16, w_ref: (TK, TN) bf16  ->  f32 accumulate on the MXU.
    acc_ref[...] += jnp.dot(
        x_ref[...], w_ref[...], preferred_element_type=jnp.float32
    )

    @pl.when(k == pl.num_programs(1) - 1)
    def _():
        o_ref[...] = (acc_ref[...] + b_ref[...] + other_ref[...]).astype(o_ref.dtype)


# ----------------------------------------------------------------------------
# Tiling helpers
# ----------------------------------------------------------------------------
def _round_up(x, m):
    return ((x + m - 1) // m) * m


def _choose_tiling(dim, target, align, prefer_even_blocks=False):
    """Returns (tile, n_blocks, padded_dim). Full-array block when dim <= target."""
    if dim <= target:
        return dim, 1, dim  # full-array block is exempt from the (8,128) rule
    nblk = pl.cdiv(dim, target)
    if prefer_even_blocks and nblk % 2 == 1:
        nblk += 1  # balance the "parallel" N axis across v7x's two TensorCores
    tile = _round_up(pl.cdiv(dim, nblk), align)
    return tile, nblk, tile * nblk


# ----------------------------------------------------------------------------
# One-time parameter prep (NOT in the per-call hot path)
# ----------------------------------------------------------------------------
def prepare_linear_params(weight, bias, *, weight_dtype=jnp.bfloat16,
                          tk_target=2048, tn_target=2048,
                          prefer_even_n_blocks=True):
    """weight: PyTorch (out, in) layout; bias: (out,).

    Casts the weight once to `weight_dtype` (bf16 streaming), transposes once
    to (K, N), and zero-pads once only if needed. Returns everything the
    per-call wrapper needs.
    """
    out_size, in_size = weight.shape

    tk, grid_k, k_pad = _choose_tiling(in_size, tk_target, 128)
    tn, grid_n, n_pad = _choose_tiling(out_size, tn_target, 128,
                                       prefer_even_n_blocks)

    w_t = jnp.asarray(weight).astype(weight_dtype).T          # (K, N), cast once
    if (k_pad, n_pad) != (in_size, out_size):
        w_t = jnp.pad(w_t, ((0, k_pad - in_size), (0, n_pad - out_size)))

    b2 = jnp.asarray(bias).astype(jnp.float32).reshape(1, out_size)
    if n_pad != out_size:
        b2 = jnp.pad(b2, ((0, 0), (0, n_pad - out_size)))

    return dict(
        w_t=w_t, b2=b2,
        in_size=in_size, out_size=out_size,
        tk=tk, grid_k=grid_k, k_pad=k_pad,
        tn=tn, grid_n=grid_n, n_pad=n_pad,
        weight_dtype=weight_dtype,
    )


# ----------------------------------------------------------------------------
# Forward: l1(input) + other
# ----------------------------------------------------------------------------
def linear_add_fwd(x, other, params):
    p = params
    in_size, out_size = p["in_size"], p["out_size"]
    k_pad, n_pad = p["k_pad"], p["n_pad"]
    tk, tn = p["tk"], p["tn"]
    grid_k, grid_n = p["grid_k"], p["grid_n"]
    wdt = p["weight_dtype"]

    # Per-call prep touches only the tiny vectors; the weight matrix streams
    # straight from its prepped HBM buffer (no per-call copy/pad/cast of W).
    x2 = x.reshape(1, in_size).astype(wdt)
    if k_pad != in_size:
        x2 = jnp.pad(x2, ((0, 0), (0, k_pad - in_size)))
    o2 = other.reshape(1, out_size).astype(jnp.float32)
    if n_pad != out_size:
        o2 = jnp.pad(o2, ((0, 0), (0, n_pad - out_size)))

    w_item = jnp.dtype(wdt).itemsize
    out = pl.pallas_call(
        linear_add_kernel,
        out_shape=jax.ShapeDtypeStruct((1, n_pad), jnp.float32),
        grid_spec=pltpu.PrefetchScalarGridSpec(
            num_scalar_prefetch=0,
            grid=(grid_n, grid_k),
            in_specs=[
                pl.BlockSpec((1, tk), lambda j, k: (0, k)),    # x   (1, K)
                pl.BlockSpec((tk, tn), lambda j, k: (k, j)),   # W^T (K, N)
                pl.BlockSpec((1, tn), lambda j, k: (0, j)),    # bias
                pl.BlockSpec((1, tn), lambda j, k: (0, j)),    # other
            ],
            out_specs=pl.BlockSpec((1, tn), lambda j, k: (0, j)),
            scratch_shapes=[pltpu.VMEM((1, tn), jnp.float32)],
        ),
        compiler_params=pltpu.CompilerParams(
            dimension_semantics=("parallel", "arbitrary"),
            # <= 8 MiB bf16 weight block, double-buffered (~16 MiB) + small
            # vector blocks: well under v7x's 64 MiB/TC; explicit raise also
            # covers v5e's 16 MiB scoped-VMEM default.
            vmem_limit_bytes=48 * 1024 * 1024,
        ),
        cost_estimate=pl.CostEstimate(
            flops=2 * k_pad * n_pad,
            transcendentals=0,
            bytes_accessed=(k_pad * n_pad * w_item          # weight stream
                            + k_pad * w_item                # x
                            + 3 * n_pad * 4),               # bias, other, out
        ),
    )(x2, p["w_t"], p["b2"], o2)

    return out[0, :out_size]


# ----------------------------------------------------------------------------
if __name__ == "__main__":
    key = jax.random.PRNGKey(0)

    # ---- Case 1: the original module shapes (in=10, out=100) ---------------
    in_size, out_size = 10, 100
    k_x, k_w, k_b = jax.random.split(key, 3)

    x = jax.random.normal(k_x, (in_size,), dtype=jnp.float32)     # torch.randn(10)
    other = jnp.arange(out_size, dtype=jnp.float32)               # torch.arange(100).float()

    bound = 1.0 / jnp.sqrt(jnp.float32(in_size))
    weight = jax.random.uniform(k_w, (out_size, in_size), jnp.float32, -bound, bound)
    bias = jax.random.uniform(k_b, (out_size,), jnp.float32, -bound, bound)

    params = prepare_linear_params(weight, bias)                  # one-time prep
    result = jax.block_until_ready(linear_add_fwd(x, other, params))
    assert result.shape == (out_size,)

    # Tight check vs a reference using the same bf16-cast operands.
    x_bf = x.astype(jnp.bfloat16).astype(jnp.float32)
    w_bf = weight.astype(jnp.bfloat16).astype(jnp.float32)
    ref_bf = jnp.dot(x_bf, w_bf.T, precision=lax.Precision.HIGHEST) + bias + other
    assert jnp.allclose(result, ref_bf, atol=1e-3, rtol=1e-3), "mismatch vs bf16 reference (small)"
    # Loose check vs the full-f32 reference (bf16 weight streaming is approved).
    ref_f32 = x @ weight.T + bias + other
    assert jnp.allclose(result, ref_f32, atol=3e-2, rtol=3e-2), "mismatch vs f32 reference (small)"

    # ---- Case 2: larger shapes exercising the gridded path ------------------
    # in2=640 -> single full K block (tk=640); out2=2304 -> tn=1152, grid_n=2
    # (even, balanced across v7x TCs), zero padding anywhere.
    in2, out2 = 640, 2304
    k2x, k2w, k2b, k2o = jax.random.split(jax.random.PRNGKey(1), 4)
    x_l = jax.random.normal(k2x, (in2,), dtype=jnp.float32)
    bound_l = 1.0 / jnp.sqrt(jnp.float32(in2))
    weight_l = jax.random.uniform(k2w, (out2, in2), jnp.float32, -bound_l, bound_l)
    bias_l = jax.random.uniform(k2b, (out2,), jnp.float32, -bound_l, bound_l)
    other_l = jax.random.normal(k2o, (out2,), dtype=jnp.float32)

    params_l = prepare_linear_params(weight_l, bias_l)
    assert params_l["k_pad"] == in2 and params_l["n_pad"] == out2  # no padding
    assert params_l["grid_n"] == 2 and params_l["grid_k"] == 1

    result_l = jax.block_until_ready(linear_add_fwd(x_l, other_l, params_l))
    assert result_l.shape == (out2,)

    x_l_bf = x_l.astype(jnp.bfloat16).astype(jnp.float32)
    w_l_bf = weight_l.astype(jnp.bfloat16).astype(jnp.float32)
    ref_l_bf = (jnp.einsum("k,nk->n", x_l_bf, w_l_bf, precision=lax.Precision.HIGHEST)
                + bias_l + other_l)
    assert jnp.allclose(result_l, ref_l_bf, atol=2e-3, rtol=2e-3), "mismatch vs bf16 reference (large)"
    ref_l_f32 = (jnp.einsum("k,nk->n", x_l, weight_l, precision=lax.Precision.HIGHEST)
                 + bias_l + other_l)
    assert jnp.allclose(result_l, ref_l_f32, atol=3e-2, rtol=3e-2), "mismatch vs f32 reference (large)"

    print("KERNEL_OK")
</pallas_src>

<mosaic_0001>
module attributes {stable_mosaic.version = 11 : i64} {
  func.func @linear_add_kernel(%arg0: i32, %arg1: i32, %arg2: memref<1x10xbf16, #tpu.memory_space<vmem>>, %arg3: memref<10x100xbf16, #tpu.memory_space<vmem>>, %arg4: memref<1x100xf32, #tpu.memory_space<vmem>>, %arg5: memref<1x100xf32, #tpu.memory_space<vmem>>, %arg6: memref<1x100xf32, #tpu.memory_space<vmem>>, %arg7: memref<1x100xf32, #tpu.memory_space<vmem>>) attributes {dimension_semantics = [#tpu.dimension_semantics<parallel>, #tpu.dimension_semantics<arbitrary>], iteration_bounds = array<i64: 1, 1>, scalar_prefetch = 0 : i64, scratch_operands = 1 : i64, tpu.core_type = #tpu.core_type<tc>, window_params = [{transform_indices = @transform_0, window_bounds = array<i64: 1, 10>}, {transform_indices = @transform_1, window_bounds = array<i64: 10, 100>}, {transform_indices = @transform_2, window_bounds = array<i64: 1, 100>}, {transform_indices = @transform_3, window_bounds = array<i64: 1, 100>}, {transform_indices = @transform_4, window_bounds = array<i64: 1, 100>}]} {
    %c0_i32 = arith.constant 0 : i32
    %0 = arith.cmpi eq, %arg1, %c0_i32 : i32
    %1 = arith.extui %0 : i1 to i32
    %c0_i32_0 = arith.constant 0 : i32
    %2 = arith.cmpi ne, %1, %c0_i32_0 : i32
    scf.if %2 {
      %cst_10 = arith.constant 0.000000e+00 : f32
      %12 = vector.broadcast %cst_10 : f32 to vector<1x100xf32>
      %c0_11 = arith.constant 0 : index
      %c0_12 = arith.constant 0 : index
      %13 = vector.load %arg7[%c0_11, %c0_12] : memref<1x100xf32, #tpu.memory_space<vmem>>, vector<1x100xf32>
      tpu.vector_store %arg7[%c0_11, %c0_12], %12 {strides = array<i32>} : memref<1x100xf32, #tpu.memory_space<vmem>>, vector<1x100xf32>,
    } else {
    }
    %c0 = arith.constant 0 : index
    %c0_1 = arith.constant 0 : index
    %3 = vector.load %arg7[%c0, %c0_1] : memref<1x100xf32, #tpu.memory_space<vmem>>, vector<1x100xf32>
    %c0_2 = arith.constant 0 : index
    %c0_3 = arith.constant 0 : index
    %4 = vector.load %arg2[%c0_2, %c0_3] : memref<1x10xbf16, #tpu.memory_space<vmem>>, vector<1x10xbf16>
    %c0_4 = arith.constant 0 : index
    %c0_5 = arith.constant 0 : index
    %5 = vector.load %arg3[%c0_4, %c0_5] : memref<10x100xbf16, #tpu.memory_space<vmem>>, vector<10x100xbf16>
    %cst = arith.constant dense<0.000000e+00> : vector<1x100xf32>
    %6 = tpu.matmul %4, %5, %cst {dimension_numbers = #tpu.dot_dimension_numbers<[1], [0], [0], [1], [0, 0, 1, 1], [], []>} : vector<1x10xbf16>, vector<10x100xbf16>, vector<1x100xf32> -> vector<1x100xf32>
    %7 = arith.addf %3, %6 : vector<1x100xf32>
    %c0_6 = arith.constant 0 : index
    %c0_7 = arith.constant 0 : index
    %8 = vector.load %arg7[%c0_6, %c0_7] : memref<1x100xf32, #tpu.memory_space<vmem>>, vector<1x100xf32>
    tpu.vector_store %arg7[%c0_6, %c0_7], %7 {strides = array<i32>} : memref<1x100xf32, #tpu.memory_space<vmem>>, vector<1x100xf32>,
    %c0_i32_8 = arith.constant 0 : i32
    %9 = arith.cmpi eq, %arg1, %c0_i32_8 : i32
    %10 = arith.extui %9 : i1 to i32
    %c0_i32_9 = arith.constant 0 : i32
    %11 = arith.cmpi ne, %10, %c0_i32_9 : i32
    scf.if %11 {
      %c0_10 = arith.constant 0 : index
      %c0_11 = arith.constant 0 : index
      %12 = vector.load %arg7[%c0_10, %c0_11] : memref<1x100xf32, #tpu.memory_space<vmem>>, vector<1x100xf32>
      %c0_12 = arith.constant 0 : index
      %c0_13 = arith.constant 0 : index
      %13 = vector.load %arg4[%c0_12, %c0_13] : memref<1x100xf32, #tpu.memory_space<vmem>>, vector<1x100xf32>
      %14 = arith.addf %12, %13 : vector<1x100xf32>
      %c0_14 = arith.constant 0 : index
      %c0_15 = arith.constant 0 : index
      %15 = vector.load %arg5[%c0_14, %c0_15] : memref<1x100xf32, #tpu.memory_space<vmem>>, vector<1x100xf32>
      %16 = arith.addf %14, %15 : vector<1x100xf32>
      %c0_16 = arith.constant 0 : index
      %c0_17 = arith.constant 0 : index
      %17 = vector.load %arg6[%c0_16, %c0_17] : memref<1x100xf32, #tpu.memory_space<vmem>>, vector<1x100xf32>
      tpu.vector_store %arg6[%c0_16, %c0_17], %16 {strides = array<i32>} : memref<1x100xf32, #tpu.memory_space<vmem>>, vector<1x100xf32>,
    } else {
    }
    return
  }
  func.func @transform_0(%arg0: i32, %arg1: i32) -> (i32, i32) {
    %c0_i32 = arith.constant 0 : i32
    %c0_i32_0 = arith.constant 0 : i32
    return %c0_i32, %arg1 : i32, i32
  }
  func.func @transform_1(%arg0: i32, %arg1: i32) -> (i32, i32) {
    %c0_i32 = arith.constant 0 : i32
    return %arg1, %arg0 : i32, i32
  }
  func.func @transform_2(%arg0: i32, %arg1: i32) -> (i32, i32) {
    %c0_i32 = arith.constant 0 : i32
    %c0_i32_0 = arith.constant 0 : i32
    return %c0_i32, %arg0 : i32, i32
  }
  func.func @transform_3(%arg0: i32, %arg1: i32) -> (i32, i32) {
    %c0_i32 = arith.constant 0 : i32
    %c0_i32_0 = arith.constant 0 : i32
    return %c0_i32, %arg0 : i32, i32
  }
  func.func @transform_4(%arg0: i32, %arg1: i32) -> (i32, i32) {
    %c0_i32 = arith.constant 0 : i32
    %c0_i32_0 = arith.constant 0 : i32
    return %c0_i32, %arg0 : i32, i32
  }
}

</mosaic_0001>

<llo_original>
// kernel: tpu_custom_call.1
$region0: #{tpu_custom_call.1}
  #allocation0 [shape = 'u32[]', space=smem, size = 0x4, offset = 0x4, fixed_abs, tag = 'smem constant byte address 0x4 - core index']
  #allocation1 [shape = 'u32[144,128]{1,0:T(1,128)}', space=vmem, size = 0x12000, scoped, tag = 'internal scratch']
  #allocation2 [shape = 'f32[1,100]{1,0:T(1,128)}', space=vmem, size = 0x200, scoped, tag = 'scratch operand']
  %s0 = inlined_call_operand.hbm [shape: bf16[1,10], index: 0, kind: input, shape index: {}]
  %s1 = inlined_call_operand.hbm [shape: bf16[10,100], index: 1, kind: input, shape index: {}]
  %s2 = inlined_call_operand.vmem [shape: f32[1,100], index: 2, kind: input, shape index: {}]
  %s3 = inlined_call_operand.vmem [shape: f32[1,100], index: 3, kind: input, shape index: {}]
  %s4 = inlined_call_operand.hbm [shape: f32[1,100], index: 4, kind: output, shape index: {}]
  %s5 = sld [smem:[#allocation0]]
  $region42: #{tpu_custom_call.1} parent=0
    _
  %s7 = ssub.s32 1, %s5
  %s8 = scalar_select 0, %s7, %s5
  $region1: #{tpu_custom_call.1} parent=0
    #allocation3 [shape = 'u8[512]{0}', space=vmem, size = 0x400, scoped, tag = 'input window, operand 0, single buffered']
    #allocation4 [shape = 's32[1]{0}', space=sflag, size = 0x4, scoped, tag = 'scoped memory for tpu_custom_call.1']
    #allocation5 [shape = 's32[1]{0}', space=sflag, size = 0x4, scoped, tag = 'scoped memory for tpu_custom_call.1']
    #allocation6 [shape = 'u8[4096]{0}', space=vmem, size = 0x1000, scoped, tag = 'input window, operand 1, single buffered']
    #allocation7 [shape = 's32[1]{0}', space=sflag, size = 0x4, scoped, tag = 'scoped memory for tpu_custom_call.1']
    #allocation8 [shape = 'u8[512]{0}', space=vmem, size = 0x400, scoped, tag = 'output window, operand 0, single buffered']
    %9 = vsyncpa [#allocation4], 0
    %10 = vsyncpa [#allocation7], 0
    %11 = vsyncpa [#allocation5], 0
    // Predicated region
    $region2: #{tpu_custom_call.1} parent=1 // pred_check
      _
    $region3: #{tpu_custom_call.1} parent=1 // pred_check_branch
      %13 = sbr.rel (0) target = $region5
    $region4: #{tpu_custom_call.1} parent=1 // pred_region
      %s15 = ssub.s32 16, 16
      %16 = vsyncadd [#allocation4], %s15
      %s18 = sshll.u32 [#allocation3], 4
      %s19 = int_to_ptr.vmem [resolvable:$true] %s18
      %21 = dma.hbm_to_vmem [thread:$0]  %s0, 16, %s19, [#allocation4]
    $region5: #{tpu_custom_call.1} parent=1 // pred_fallthru
      _
    // Predicated region
    $region6: #{tpu_custom_call.1} parent=1 // pred_check
      _
    $region7: #{tpu_custom_call.1} parent=1 // pred_check_branch
      %23 = sbr.rel (0) target = $region9
    $region8: #{tpu_custom_call.1} parent=1 // pred_region
      %s25 = ssub.s32 128, 128
      %26 = vsyncadd [#allocation7], %s25
      %s27 = sshll.u32 [#allocation6], 4
      %s28 = int_to_ptr.vmem [resolvable:$true] %s27
      %33 = dma.hbm_to_vmem [thread:$0]  %s1, 128, %s28, [#allocation7], 64, 64, 4
    $region9: #{tpu_custom_call.1} parent=1 // pred_fallthru
      _
    // Predicated region
    $region10: #{tpu_custom_call.1} parent=1 // pred_check
      _
    $region11: #{tpu_custom_call.1} parent=1 // pred_check_branch
      %35 = sbr.rel (0) target = $region13
    $region12: #{tpu_custom_call.1} parent=1 // pred_region
      _
    $region13: #{tpu_custom_call.1} parent=1 // pred_fallthru
      _
    // Predicated region
    $region14: #{tpu_custom_call.1} parent=1 // pred_check
      _
    $region15: #{tpu_custom_call.1} parent=1 // pred_check_branch
      %37 = sbr.rel (0) target = $region17
    $region16: #{tpu_custom_call.1} parent=1 // pred_region
      _
    $region17: #{tpu_custom_call.1} parent=1 // pred_fallthru
      _
    // Predicated region
    $region18: #{tpu_custom_call.1} parent=1 // pred_check
      _
    $region19: #{tpu_custom_call.1} parent=1 // pred_check_branch
      %39 = sbr.rel (0) target = $region21
    $region20: #{tpu_custom_call.1} parent=1 // pred_region
      %40 = dma.done [#allocation4], 16
    $region21: #{tpu_custom_call.1} parent=1 // pred_fallthru
      _
    // Predicated region
    $region22: #{tpu_custom_call.1} parent=1 // pred_check
      _
    $region23: #{tpu_custom_call.1} parent=1 // pred_check_branch
      %42 = sbr.rel (0) target = $region25
    $region24: #{tpu_custom_call.1} parent=1 // pred_region
      %43 = dma.done [#allocation7], 128
    $region25: #{tpu_custom_call.1} parent=1 // pred_fallthru
      _
    %p45 = scmp.eq.s32.totalorder 0, 0
    // Predicated region
    $region26: #{tpu_custom_call.1} parent=1 // pred_check
      %p46 = pneg %p45
    $region27: #{tpu_custom_call.1} parent=1 // pred_check_branch
      %48 = sbr.rel (%p46) target = $region29
    $region28: #{tpu_custom_call.1} parent=1 // pred_region
      %vm49 = vcmask 811008
      %50 = vst.msk [vmem:[#allocation2] sm:$0x1] %vm49, 0.0
    $region29: #{tpu_custom_call.1} parent=1 // pred_fallthru
      _
    %v51 = vld [vmem:[#allocation2] sm:$0x1]
    %v52 = vld [vmem:[#allocation3] sm:$0x1]
    %v53 = vld [vmem:[#allocation6] sm:$0xf]
    %v54 = vld [vmem:[#allocation6 + $0x4] sm:$0x1]
    %v57 = vunpack.c.l.b16 %v53
    %v58 = vunpack.c.l.b16 %v54
    %v59 = vpack.c.b16 %v58, %v57
    %vm60 = vcmask 80896
    %v62 = vsel %vm60, %v52, 0
    %vm64 = vcmask 1044480
    %v66 = vsel %vm64, %v59, 0
    %68 = vmatprep.subr.bf16.mxu0 0
    %69 = vmatpush1.bf16.msra.mxu0 0
    %70 = vmatprep.subr.bf16.mxu0 0
    %71 = vmatpush1.bf16.msra.mxu0 0
    %72 = vmatprep.subr.bf16.mxu0 0
    %73 = vmatpush1.bf16.msra.mxu0 0
    %74 = vmatprep.subr.bf16.mxu0 0
    %75 = vmatpush1.bf16.msra.mxu0 0
    %76 = vmatprep.subr.bf16.mxu0 0
    %77 = vmatpush1.bf16.msra.mxu0 0
    %78 = vmatprep.subr.bf16.mxu0 0
    %79 = vmatpush1.bf16.msra.mxu0 0
    %80 = vmatprep.subr.bf16.mxu0 0
    %81 = vmatpush1.bf16.msra.mxu0 0
    %82 = vmatprep.subr.bf16.mxu0 0
    %83 = vmatpush1.bf16.msra.mxu0 %v66
    %84 = vmatprep.subr.bf16.mxu0 0
    %85 = vmatpush2.bf16.msra.mxu0 0
    %86 = vmatprep.subr.bf16.mxu0 0
    %87 = vmatpush2.bf16.msra.mxu0 0
    %88 = vmatprep.subr.bf16.mxu0 0
    %89 = vmatpush2.bf16.msra.mxu0 0
    %90 = vmatprep.subr.bf16.mxu0 0
    %91 = vmatpush2.bf16.msra.mxu0 0
    %92 = vmatprep.subr.bf16.mxu0 0
    %93 = vmatpush2.bf16.msra.mxu0 0
    %94 = vmatprep.subr.bf16.mxu0 0
    %95 = vmatpush2.bf16.msra.mxu0 0
    %96 = vmatprep.subr.bf16.mxu0 0
    %97 = vmatpush2.bf16.msra.mxu0 0
    %98 = vmatprep.subr.bf16.mxu0 0
    %99 = vmatpush2.bf16.msra.mxu0 0
    %100 = vmatprep.mubr.bf16.mxu0 0
    %101 = vmatmul.mubr.bf16.gmra.mxu0 %v62
    %v102 = vpop.f32.mrf.mxu0
    %v103 = vadd.f32 0.0, %v102
    %v104 = vpop.f32.mrf.mxu0
    %v105 = vpop.f32.mrf.mxu0
    %v106 = vpop.f32.mrf.mxu0
    %107 = vdwg.mxu0
    %v108 = vadd.f32 %v51, %v103
    %vm109 = vcmask 811008
    %110 = vst.msk [vmem:[#allocation2] sm:$0x1] %vm109, %v108
    // Predicated region
    $region30: #{tpu_custom_call.1} parent=1 // pred_check
      %p111 = pneg %p45
    $region31: #{tpu_custom_call.1} parent=1 // pred_check_branch
      %113 = sbr.rel (%p111) target = $region33
    $region32: #{tpu_custom_call.1} parent=1 // pred_region
      %v114 = vld [vmem:[#allocation2] sm:$0x1]
      %v115 = vld [vmem:[%s2] sm:$0x1]
      %v116 = vadd.f32 %v114, %v115
      %v117 = vld [vmem:[%s3] sm:$0x1]
      %v118 = vadd.f32 %v116, %v117
      %119 = vst.msk [vmem:[#allocation8] sm:$0x1] %vm109, %v118
    $region33: #{tpu_custom_call.1} parent=1 // pred_fallthru
      _
    // Predicated region
    $region34: #{tpu_custom_call.1} parent=1 // pred_check
      _
    $region35: #{tpu_custom_call.1} parent=1 // pred_check_branch
      %121 = sbr.rel (0) target = $region37
    $region36: #{tpu_custom_call.1} parent=1 // pred_region
      %s123 = ssub.s32 16, 16
      %124 = vsyncadd [#allocation5], %s123
      %s126 = sshll.u32 [#allocation8], 4
      %s127 = int_to_ptr.vmem [resolvable:$true] %s126
      %129 = dma.vmem_to_hbm [thread:$0]  %s127, 16, %s4, [#allocation5]
    $region37: #{tpu_custom_call.1} parent=1 // pred_fallthru
      _
    // Predicated region
    $region38: #{tpu_custom_call.1} parent=1 // pred_check
      _
    $region39: #{tpu_custom_call.1} parent=1 // pred_check_branch
      %131 = sbr.rel (0) target = $region41
    $region40: #{tpu_custom_call.1} parent=1 // pred_region
      %132 = dma.done [#allocation5], 16
    $region41: #{tpu_custom_call.1} parent=1 // pred_fallthru
      _
    %133 = vsyncpa [#allocation4], 1
    %134 = vsyncpa [#allocation7], 1
    %135 = vsyncpa [#allocation5], 1

</llo_original>
